<compile_context>
chip_gen: v6e
topology: v6e:2x2x1
jax: 0.10.0
libtpu: 0.0.40
codegen_flags: <defaults>
</compile_context>

<pallas_src>
import math

import jax
import jax.numpy as jnp
from jax.experimental import pallas as pl
from jax.experimental.pallas import tpu as pltpu

_LANE = 128
# Per-tile byte budget. BlockSpec double-buffers each operand, so peak VMEM is
# roughly 2*(in) + 2*(out) = 4x this -> ~8 MiB, well under every chip's limit.
_TILE_BYTE_BUDGET = 2 * 1024 * 1024


def _identity_copy_kernel(x_ref, o_ref):
    # Blocks are shape-matched: pure copy, no reshape/relayout inside VMEM.
    o_ref[...] = x_ref[...]


def _choose_tiling(total: int, itemsize: int):
    """Pick (R, L, TR): copy a row-major (R, L) slab in (TR, L) lane-dense tiles."""
    if total == 0 or total % _LANE != 0:
        return None
    # Sublane alignment for packed dtypes: 8 for f32, 16 for bf16, 32 for int8.
    sub = max(8, 32 // max(1, itemsize))
    # Grow lane width while rows stay tileable and one row-group fits the budget.
    L = _LANE
    while (
        total % (L * 2) == 0
        and total // (L * 2) >= sub
        and L * 2 * sub * itemsize <= _TILE_BYTE_BUDGET
    ):
        L *= 2
    R = total // L
    if R % sub != 0:
        # Rows not sublane-aligned: legal only as a single full-dim block.
        if R * L * itemsize <= _TILE_BYTE_BUDGET:
            return (R, L, R)
        return None
    # Largest sublane-aligned row tile that divides R and fits the budget.
    tr_cap = max(sub, min(R, _TILE_BYTE_BUDGET // (L * itemsize)))
    tr_cap -= tr_cap % sub
    TR = sub
    for t in range(tr_cap, sub - 1, -sub):
        if R % t == 0:
            TR = t
            break
    return (R, L, TR)


def ssbh_size_detector(x: jax.Array) -> jax.Array:
    """Equivalent of SSBH_size_detector()(x): print the size, return x."""
    # Mirrors `print(x.size())` (host-side, at call/trace time).
    print(tuple(x.shape))

    if x.ndim == 0 or x.size == 0:
        return x

    total = math.prod(x.shape)
    itemsize = jnp.dtype(x.dtype).itemsize
    tiling = _choose_tiling(total, itemsize)
    if tiling is None:
        # TODO(synk): shapes that don't factor into lane-dense tiles are returned
        # as-is (identity is a zero-cost view; no standalone copy is needed).
        return x

    R, L, TR = tiling
    # Free row-major metadata reshape; the kernel sees a lane-dense 2-D slab.
    x2 = x.reshape(R, L)

    y2 = pl.pallas_call(
        _identity_copy_kernel,
        out_shape=jax.ShapeDtypeStruct((R, L), x.dtype),
        grid_spec=pltpu.PrefetchScalarGridSpec(
            num_scalar_prefetch=0,
            grid=(R // TR,),
            in_specs=[pl.BlockSpec((TR, L), lambda i: (i, 0))],
            out_specs=pl.BlockSpec((TR, L), lambda i: (i, 0)),
        ),
        compiler_params=pltpu.CompilerParams(
            # Row tiles are independent -> shard across TensorCores on v7x;
            # harmless on single-TC v5e/v6e.
            dimension_semantics=("parallel",),
            vmem_limit_bytes=32 * 1024 * 1024,
        ),
    )(x2)

    # Free metadata reshape back to the original shape (identity semantics).
    return y2.reshape(x.shape)


if __name__ == "__main__":
    # Small NCHW feature map consistent with the surrounding AE network.
    key = jax.random.PRNGKey(0)
    B, C, H, W = 2, 4, 16, 16
    x = jax.random.normal(key, (B, C, H, W), dtype=jnp.float32)

    y = ssbh_size_detector(x)
    y = jax.block_until_ready(y)

    assert y.shape == x.shape, y.shape
    assert y.dtype == x.dtype, y.dtype
    assert jnp.array_equal(y, x), "identity pass-through mismatch"

    print("KERNEL_OK")
</pallas_src>

<mosaic_0001>
module attributes {stable_mosaic.version = 11 : i64} {
  func.func @_identity_copy_kernel(%arg0: i32, %arg1: memref<8x256xf32, #tpu.memory_space<vmem>>, %arg2: memref<8x256xf32, #tpu.memory_space<vmem>>) attributes {dimension_semantics = [#tpu.dimension_semantics<parallel>], iteration_bounds = array<i64: 1>, scalar_prefetch = 0 : i64, scratch_operands = 0 : i64, tpu.core_type = #tpu.core_type<tc>, window_params = [{transform_indices = @transform_0, window_bounds = array<i64: 8, 256>}, {transform_indices = @transform_1, window_bounds = array<i64: 8, 256>}]} {
    %c0 = arith.constant 0 : index
    %c0_0 = arith.constant 0 : index
    %0 = vector.load %arg1[%c0, %c0_0] : memref<8x256xf32, #tpu.memory_space<vmem>>, vector<8x256xf32>
    %c0_1 = arith.constant 0 : index
    %c0_2 = arith.constant 0 : index
    %1 = vector.load %arg2[%c0_1, %c0_2] : memref<8x256xf32, #tpu.memory_space<vmem>>, vector<8x256xf32>
    tpu.vector_store %arg2[%c0_1, %c0_2], %0 {strides = array<i32>} : memref<8x256xf32, #tpu.memory_space<vmem>>, vector<8x256xf32>,
    return
  }
  func.func @transform_0(%arg0: i32) -> (i32, i32) {
    %c0_i32 = arith.constant 0 : i32
    %c0_i32_0 = arith.constant 0 : i32
    return %arg0, %c0_i32 : i32, i32
  }
  func.func @transform_1(%arg0: i32) -> (i32, i32) {
    %c0_i32 = arith.constant 0 : i32
    %c0_i32_0 = arith.constant 0 : i32
    return %arg0, %c0_i32 : i32, i32
  }
}

</mosaic_0001>

<llo_original>
// kernel: tpu_custom_call.1
$region0: #{tpu_custom_call.1}
  #allocation0 [shape = 'u32[]', space=smem, size = 0x4, offset = 0x4, fixed_abs, tag = 'smem constant byte address 0x4 - core index']
  #allocation1 [shape = 'u32[144,128]{1,0:T(1,128)}', space=vmem, size = 0x12000, scoped, tag = 'internal scratch']
  %s0 = inlined_call_operand.hbm [shape: f32[8,256], index: 0, kind: input, shape index: {}]
  %s1 = inlined_call_operand.hbm [shape: f32[8,256], index: 1, kind: output, shape index: {}]
  %s2 = sld [smem:[#allocation0]]
  $region18: #{tpu_custom_call.1} parent=0
    _
  %s4 = ssub.s32 1, %s2
  %s5 = scalar_select 0, %s4, %s2
  $region1: #{tpu_custom_call.1} parent=0
    #allocation2 [shape = 'u8[8192]{0}', space=vmem, size = 0x2000, scoped, tag = 'input window, operand 0, single buffered']
    #allocation3 [shape = 's32[1]{0}', space=sflag, size = 0x4, scoped, tag = 'scoped memory for tpu_custom_call.1']
    #allocation4 [shape = 's32[1]{0}', space=sflag, size = 0x4, scoped, tag = 'scoped memory for tpu_custom_call.1']
    #allocation5 [shape = 'u8[8192]{0}', space=vmem, size = 0x2000, scoped, tag = 'output window, operand 0, single buffered']
    %6 = vsyncpa [#allocation3], 0
    %7 = vsyncpa [#allocation4], 0
    // Predicated region
    $region2: #{tpu_custom_call.1} parent=1 // pred_check
      _
    $region3: #{tpu_custom_call.1} parent=1 // pred_check_branch
      %9 = sbr.rel (0) target = $region5
    $region4: #{tpu_custom_call.1} parent=1 // pred_region
      %s11 = ssub.s32 256, 256
      %12 = vsyncadd [#allocation3], %s11
      %s14 = sshll.u32 [#allocation2], 4
      %s15 = int_to_ptr.vmem [resolvable:$true] %s14
      %17 = dma.hbm_to_vmem [thread:$0]  %s0, 256, %s15, [#allocation3]
    $region5: #{tpu_custom_call.1} parent=1 // pred_fallthru
      _
    // Predicated region
    $region6: #{tpu_custom_call.1} parent=1 // pred_check
      _
    $region7: #{tpu_custom_call.1} parent=1 // pred_check_branch
      %19 = sbr.rel (0) target = $region9
    $region8: #{tpu_custom_call.1} parent=1 // pred_region
      %20 = dma.done [#allocation3], 256
    $region9: #{tpu_custom_call.1} parent=1 // pred_fallthru
      _
    %v21 = vld [vmem:[#allocation2] sm:$0xff]
    %v22 = vld [vmem:[#allocation2 + $0x8] sm:$0xff]
    %23 = vst [vmem:[#allocation5] sm:$0xff] %v21
    %24 = vst [vmem:[#allocation5 + $0x8] sm:$0xff] %v22
    // Predicated region
    $region10: #{tpu_custom_call.1} parent=1 // pred_check
      _
    $region11: #{tpu_custom_call.1} parent=1 // pred_check_branch
      %26 = sbr.rel (0) target = $region13
    $region12: #{tpu_custom_call.1} parent=1 // pred_region
      %s28 = ssub.s32 256, 256
      %29 = vsyncadd [#allocation4], %s28
      %s31 = sshll.u32 [#allocation5], 4
      %s32 = int_to_ptr.vmem [resolvable:$true] %s31
      %34 = dma.vmem_to_hbm [thread:$0]  %s32, 256, %s1, [#allocation4]
    $region13: #{tpu_custom_call.1} parent=1 // pred_fallthru
      _
    // Predicated region
    $region14: #{tpu_custom_call.1} parent=1 // pred_check
      _
    $region15: #{tpu_custom_call.1} parent=1 // pred_check_branch
      %36 = sbr.rel (0) target = $region17
    $region16: #{tpu_custom_call.1} parent=1 // pred_region
      %37 = dma.done [#allocation4], 256
    $region17: #{tpu_custom_call.1} parent=1 // pred_fallthru
      _
    %38 = vsyncpa [#allocation3], 1
    %39 = vsyncpa [#allocation4], 1

</llo_original>
